<compile_context>
chip_gen: v5e
topology: v5e:2x2
jax: 0.10.0
libtpu: 0.0.40
codegen_flags: <defaults>
</compile_context>

<pallas_src>
import functools
import math

import jax
import jax.numpy as jnp
from jax.experimental import pallas as pl
from jax.experimental.pallas import tpu as pltpu


def _proj_kernel(x_ref, wk_ref, bk_ref, wq_ref, bq_ref, wv_ref, bv_ref,
                 k_ref, q_ref, v_ref):
    """k/q/v projections for one (batch, row-tile) block.

    1/sqrt(head_size) is pre-folded into wk/bk on the host. x is cast to the
    MXU compute dtype (wk_ref.dtype) in-kernel (VPU cast, no extra HBM pass);
    biases stay fp32 and are added to the fp32 MXU accumulation.
    """
    x = x_ref[...].astype(wk_ref.dtype)                              # (tp, C)
    k = jnp.dot(x, wk_ref[...], preferred_element_type=jnp.float32) + bk_ref[...]
    q = jnp.dot(x, wq_ref[...], preferred_element_type=jnp.float32) + bq_ref[...]
    v = jnp.dot(x, wv_ref[...], preferred_element_type=jnp.float32) + bv_ref[...]
    k_ref[...] = k.astype(k_ref.dtype)
    q_ref[...] = q.astype(q_ref.dtype)
    v_ref[...] = v.astype(v_ref.dtype)


def _flash_kernel(k_ref, q_ref, v_ref, o_ref, m_sc, l_sc, acc_sc):
    """Online-softmax attention with the module's swapped k/q roles.

    w = k @ q^T: rows are k positions (tile i, parallel), columns are q
    positions (tile j, innermost "arbitrary" reduction axis). Running
    max / denominator / fp32 accumulator live in VMEM scratch.

    Tile classes (ti == tj):
      j <  i : fully below the causal diagonal -> unmasked fast path
      j == i : straddles the diagonal          -> masked path + finalize
      j >  i : fully masked                    -> no compute; q/v index maps are
               clamped to i so these steps also issue no DMA.
    """
    i = pl.program_id(1)                  # score-row (k) tile
    j = pl.program_id(2)                  # score-col (q/v) tile — reduction

    @pl.when(j == 0)
    def _():
        m_sc[...] = jnp.full_like(m_sc, -jnp.inf)
        l_sc[...] = jnp.zeros_like(l_sc)
        acc_sc[...] = jnp.zeros_like(acc_sc)

    def scores():
        # w[r, c] = k[r] . q[c]: contract over head dim, no transposed copy.
        return jax.lax.dot_general(
            k_ref[...], q_ref[...],
            dimension_numbers=(((1,), (1,)), ((), ())),
            preferred_element_type=jnp.float32)                     # (ti, tj)

    def online_update(s):
        m_prev = m_sc[...]
        m_new = jnp.maximum(m_prev, jnp.max(s, axis=-1, keepdims=True))
        alpha = jnp.exp(m_prev - m_new)
        p = jnp.exp(s - m_new)
        l_sc[...] = alpha * l_sc[...] + jnp.sum(p, axis=-1, keepdims=True)
        acc_sc[...] = alpha * acc_sc[...] + jnp.dot(
            p.astype(v_ref.dtype), v_ref[...],
            preferred_element_type=jnp.float32)
        m_sc[...] = m_new

    @pl.when(j < i)
    def _():                               # unmasked fast path
        online_update(scores())

    @pl.when(j == i)
    def _():                               # diagonal tile: mask, then finalize
        s = scores()
        # ti == tj, so on the diagonal the global offsets cancel: local iotas.
        row = jax.lax.broadcasted_iota(jnp.int32, s.shape, 0)
        col = jax.lax.broadcasted_iota(jnp.int32, s.shape, 1)
        online_update(jnp.where(col > row, -jnp.inf, s))

        # j == i is the last column tile that can contribute to this row tile;
        # finalize here (upper-triangular steps that follow do nothing).
        # Dropout: identity (eval mode). Exact reciprocal: off the hot loop.
        inv_l = pl.reciprocal(l_sc[...], approx=False)
        o_ref[...] = (acc_sc[...] * inv_l).astype(o_ref.dtype)


def _pick_tile(T, pref):
    """Largest power-of-two tile <= pref dividing T (or full T)."""
    if T <= pref:
        return T
    t = pref
    while t >= 8:
        if T % t == 0:
            return t
        t //= 2
    return T  # fallback: single full-extent tile (always legal)


def _default_attn_tile():
    # v5e (and older) MXU passes are 128 wide -> 128 tiles already saturate it;
    # v6e / v7x MXU is 2x(256x256) -> 256 tiles feed it properly and halve the
    # number of grid steps (~0.35us each).
    try:
        kind = jax.devices()[0].device_kind.lower()
    except Exception:
        return 128
    if any(v in kind for v in ("v2", "v3", "v4", "v5")):
        return 128
    return 256


def attention_head(x, wk, bk, wq, bq, wv, bv, head_size, *,
                   tile=None, compute_dtype=jnp.bfloat16):
    """x: (B, T, C). Weights pre-transposed as (C, H); biases (H,).

    compute_dtype is the MXU operand dtype (bf16 by default; accumulation is
    always fp32). Output dtype matches x.dtype.
    """
    B, T, C = x.shape
    H = head_size
    scale = 1.0 / math.sqrt(float(H))

    # Fold the 1/sqrt(H) score scale into the k projection (weights + bias),
    # cast weights to the MXU compute dtype once on the host; biases stay fp32.
    wk_c = (wk * scale).astype(compute_dtype)
    wq_c = wq.astype(compute_dtype)
    wv_c = wv.astype(compute_dtype)
    bk_c = (bk * scale).astype(jnp.float32).reshape(1, H)
    bq_c = bq.astype(jnp.float32).reshape(1, H)
    bv_c = bv.astype(jnp.float32).reshape(1, H)

    # ---- Kernel 1: projections (large independent row tile, true head dim) --
    tp = _pick_tile(T, 512)
    wspec = pl.BlockSpec((C, H), lambda b, t: (0, 0))
    bspec = pl.BlockSpec((1, H), lambda b, t: (0, 0))
    xspec = pl.BlockSpec((pl.Squeezed(), tp, C), lambda b, t: (b, t, 0))
    pspec = pl.BlockSpec((pl.Squeezed(), tp, H), lambda b, t: (b, t, 0))

    k_s, q_p, v_p = pl.pallas_call(
        _proj_kernel,
        out_shape=(jax.ShapeDtypeStruct((B, T, H), compute_dtype),) * 3,
        grid_spec=pltpu.PrefetchScalarGridSpec(
            num_scalar_prefetch=0,
            grid=(B, T // tp),
            in_specs=[xspec, wspec, bspec, wspec, bspec, wspec, bspec],
            out_specs=(pspec, pspec, pspec),
        ),
        compiler_params=pltpu.CompilerParams(
            dimension_semantics=("parallel", "parallel")),
    )(x, wk_c, bk_c, wq_c, bq_c, wv_c, bv_c)

    # ---- Kernel 2: flash-style tiled attention with online softmax ----------
    tt = _pick_tile(T, tile if tile is not None else _default_attn_tile())
    nt = T // tt

    # k and the output stay resident across the whole j (reduction) axis; q/v
    # index maps are clamped to min(i, j) so fully-masked upper-triangular
    # steps re-use the resident block and issue no DMA.
    # NOTE(v7x megacore): the parallel axes are (B, i); keep B*nt >= 2 so both
    # TensorCores get work (true for any realistic T with these tile sizes).
    out = pl.pallas_call(
        _flash_kernel,
        out_shape=jax.ShapeDtypeStruct((B, T, H), x.dtype),
        grid_spec=pltpu.PrefetchScalarGridSpec(
            num_scalar_prefetch=0,
            grid=(B, nt, nt),
            in_specs=[
                pl.BlockSpec((pl.Squeezed(), tt, H),
                             lambda b, i, j: (b, i, 0)),
                pl.BlockSpec((pl.Squeezed(), tt, H),
                             lambda b, i, j: (b, jnp.minimum(i, j), 0)),
                pl.BlockSpec((pl.Squeezed(), tt, H),
                             lambda b, i, j: (b, jnp.minimum(i, j), 0)),
            ],
            out_specs=pl.BlockSpec((pl.Squeezed(), tt, H),
                                   lambda b, i, j: (b, i, 0)),
            scratch_shapes=[
                pltpu.VMEM((tt, 1), jnp.float32),     # running max
                pltpu.VMEM((tt, 1), jnp.float32),     # running denominator
                pltpu.VMEM((tt, H), jnp.float32),     # fp32 output accumulator
            ],
        ),
        compiler_params=pltpu.CompilerParams(
            dimension_semantics=("parallel", "parallel", "arbitrary")),
    )(k_s, q_p, v_p)

    return out


def attention_head_ref(x, wk, bk, wq, bq, wv, bv, head_size):
    """Pure-JAX reference mirroring the PyTorch forward."""
    k = x @ wk + bk
    q = x @ wq + bq
    v = x @ wv + bv
    w = (k @ jnp.swapaxes(q, 1, 2)) / jnp.sqrt(jnp.float32(head_size))
    T = x.shape[1]
    mask = jnp.tril(jnp.ones((T, T), jnp.float32))
    w = jnp.where(mask == 0, -jnp.inf, w)
    w = jax.nn.softmax(w, axis=-1)
    return w @ v


if __name__ == "__main__":
    def init_params(key, C, H):
        ks = jax.random.split(key, 6)
        s = 1.0 / math.sqrt(C)
        wk = jax.random.uniform(ks[0], (C, H), jnp.float32, -s, s)
        bk = jax.random.uniform(ks[1], (H,), jnp.float32, -s, s)
        wq = jax.random.uniform(ks[2], (C, H), jnp.float32, -s, s)
        bq = jax.random.uniform(ks[3], (H,), jnp.float32, -s, s)
        wv = jax.random.uniform(ks[4], (C, H), jnp.float32, -s, s)
        bv = jax.random.uniform(ks[5], (H,), jnp.float32, -s, s)
        return wk, bk, wq, bq, wv, bv

    key = jax.random.PRNGKey(0)

    # Case 1: module-consistent small shapes (block_size = T = 8), fp32
    # operands for a tight semantic check (exact reciprocal now).
    B, T, C, H = 2, 8, 32, 16
    kx, kp = jax.random.split(key)
    x = jax.random.normal(kx, (B, T, C), dtype=jnp.float32)
    params = init_params(kp, C, H)
    out = jax.block_until_ready(
        attention_head(x, *params, H, compute_dtype=jnp.float32))
    ref = attention_head_ref(x, *params, H)
    assert out.shape == (B, T, H)
    assert jnp.allclose(out, ref, atol=5e-3, rtol=5e-3), "mismatch (case 1)"

    # Case 2: forces the multi-tile flash path (unmasked fast path, diagonal
    # masked tiles, skipped upper-triangular tiles, clamped q/v index maps).
    B2, T2, C2, H2 = 1, 256, 64, 16
    kx2, kp2 = jax.random.split(kp)
    x2 = jax.random.normal(kx2, (B2, T2, C2), dtype=jnp.float32)
    params2 = init_params(kp2, C2, H2)
    out2 = jax.block_until_ready(
        attention_head(x2, *params2, H2, tile=64, compute_dtype=jnp.float32))
    ref2 = attention_head_ref(x2, *params2, H2)
    assert out2.shape == (B2, T2, H2)
    assert jnp.allclose(out2, ref2, atol=5e-3, rtol=5e-3), "mismatch (case 2)"

    # Case 3: performance defaults (bf16 MXU operands, chip-dependent tile).
    # Looser tolerance only accounts for bf16 operand rounding vs the fp32 ref.
    out3 = jax.block_until_ready(attention_head(x2, *params2, H2))
    assert out3.shape == (B2, T2, H2)
    assert jnp.allclose(out3, ref2, atol=5e-2, rtol=5e-2), "mismatch (case 3)"

    print("KERNEL_OK")
</pallas_src>

<mosaic_0001>
module attributes {stable_mosaic.version = 11 : i64} {
  func.func @_proj_kernel(%arg0: i32, %arg1: i32, %arg2: memref<1x8x32xf32, #tpu.memory_space<vmem>>, %arg3: memref<32x16xf32, #tpu.memory_space<vmem>>, %arg4: memref<1x16xf32, #tpu.memory_space<vmem>>, %arg5: memref<32x16xf32, #tpu.memory_space<vmem>>, %arg6: memref<1x16xf32, #tpu.memory_space<vmem>>, %arg7: memref<32x16xf32, #tpu.memory_space<vmem>>, %arg8: memref<1x16xf32, #tpu.memory_space<vmem>>, %arg9: memref<1x8x16xf32, #tpu.memory_space<vmem>>, %arg10: memref<1x8x16xf32, #tpu.memory_space<vmem>>, %arg11: memref<1x8x16xf32, #tpu.memory_space<vmem>>) attributes {dimension_semantics = [#tpu.dimension_semantics<parallel>, #tpu.dimension_semantics<parallel>], iteration_bounds = array<i64: 2, 1>, scalar_prefetch = 0 : i64, scratch_operands = 0 : i64, tpu.core_type = #tpu.core_type<tc>, window_params = [{transform_indices = @transform_0, window_bounds = array<i64: 1, 8, 32>}, {pipeline_mode = #tpu.pipeline_mode<synchronous>, transform_indices = @transform_1, window_bounds = array<i64: 32, 16>}, {pipeline_mode = #tpu.pipeline_mode<synchronous>, transform_indices = @transform_2, window_bounds = array<i64: 1, 16>}, {pipeline_mode = #tpu.pipeline_mode<synchronous>, transform_indices = @transform_3, window_bounds = array<i64: 32, 16>}, {pipeline_mode = #tpu.pipeline_mode<synchronous>, transform_indices = @transform_4, window_bounds = array<i64: 1, 16>}, {pipeline_mode = #tpu.pipeline_mode<synchronous>, transform_indices = @transform_5, window_bounds = array<i64: 32, 16>}, {pipeline_mode = #tpu.pipeline_mode<synchronous>, transform_indices = @transform_6, window_bounds = array<i64: 1, 16>}, {transform_indices = @transform_7, window_bounds = array<i64: 1, 8, 16>}, {transform_indices = @transform_8, window_bounds = array<i64: 1, 8, 16>}, {transform_indices = @transform_9, window_bounds = array<i64: 1, 8, 16>}]} {
    %c0 = arith.constant 0 : index
    %c0_0 = arith.constant 0 : index
    %c0_1 = arith.constant 0 : index
    %0 = vector.load %arg2[%c0, %c0_0, %c0_1] : memref<1x8x32xf32, #tpu.memory_space<vmem>>, vector<1x8x32xf32>
    %1 = vector.shape_cast %0 : vector<1x8x32xf32> to vector<8x32xf32>
    %c0_2 = arith.constant 0 : index
    %c0_3 = arith.constant 0 : index
    %2 = vector.load %arg3[%c0_2, %c0_3] : memref<32x16xf32, #tpu.memory_space<vmem>>, vector<32x16xf32>
    %cst = arith.constant dense<0.000000e+00> : vector<8x16xf32>
    %3 = tpu.matmul %1, %2, %cst {dimension_numbers = #tpu.dot_dimension_numbers<[1], [0], [0], [1], [0, 0, 1, 1], [], []>} : vector<8x32xf32>, vector<32x16xf32>, vector<8x16xf32> -> vector<8x16xf32>
    %c0_4 = arith.constant 0 : index
    %c0_5 = arith.constant 0 : index
    %4 = vector.load %arg4[%c0_4, %c0_5] : memref<1x16xf32, #tpu.memory_space<vmem>>, vector<1x16xf32>
    %5 = vector.broadcast %4 : vector<1x16xf32> to vector<8x16xf32>
    %6 = arith.addf %3, %5 : vector<8x16xf32>
    %c0_6 = arith.constant 0 : index
    %c0_7 = arith.constant 0 : index
    %7 = vector.load %arg5[%c0_6, %c0_7] : memref<32x16xf32, #tpu.memory_space<vmem>>, vector<32x16xf32>
    %cst_8 = arith.constant dense<0.000000e+00> : vector<8x16xf32>
    %8 = tpu.matmul %1, %7, %cst_8 {dimension_numbers = #tpu.dot_dimension_numbers<[1], [0], [0], [1], [0, 0, 1, 1], [], []>} : vector<8x32xf32>, vector<32x16xf32>, vector<8x16xf32> -> vector<8x16xf32>
    %c0_9 = arith.constant 0 : index
    %c0_10 = arith.constant 0 : index
    %9 = vector.load %arg6[%c0_9, %c0_10] : memref<1x16xf32, #tpu.memory_space<vmem>>, vector<1x16xf32>
    %10 = vector.broadcast %9 : vector<1x16xf32> to vector<8x16xf32>
    %11 = arith.addf %8, %10 : vector<8x16xf32>
    %c0_11 = arith.constant 0 : index
    %c0_12 = arith.constant 0 : index
    %12 = vector.load %arg7[%c0_11, %c0_12] : memref<32x16xf32, #tpu.memory_space<vmem>>, vector<32x16xf32>
    %cst_13 = arith.constant dense<0.000000e+00> : vector<8x16xf32>
    %13 = tpu.matmul %1, %12, %cst_13 {dimension_numbers = #tpu.dot_dimension_numbers<[1], [0], [0], [1], [0, 0, 1, 1], [], []>} : vector<8x32xf32>, vector<32x16xf32>, vector<8x16xf32> -> vector<8x16xf32>
    %c0_14 = arith.constant 0 : index
    %c0_15 = arith.constant 0 : index
    %14 = vector.load %arg8[%c0_14, %c0_15] : memref<1x16xf32, #tpu.memory_space<vmem>>, vector<1x16xf32>
    %15 = vector.broadcast %14 : vector<1x16xf32> to vector<8x16xf32>
    %16 = arith.addf %13, %15 : vector<8x16xf32>
    %c0_16 = arith.constant 0 : index
    %c0_17 = arith.constant 0 : index
    %c0_18 = arith.constant 0 : index
    %17 = vector.load %arg9[%c0_16, %c0_17, %c0_18] : memref<1x8x16xf32, #tpu.memory_space<vmem>>, vector<1x8x16xf32>
    %18 = vector.shape_cast %17 : vector<1x8x16xf32> to vector<8x16xf32>
    %19 = vector.shape_cast %6 : vector<8x16xf32> to vector<1x8x16xf32>
    tpu.vector_store %arg9[%c0_16, %c0_17, %c0_18], %19 {strides = array<i32>} : memref<1x8x16xf32, #tpu.memory_space<vmem>>, vector<1x8x16xf32>,
    %c0_19 = arith.constant 0 : index
    %c0_20 = arith.constant 0 : index
    %c0_21 = arith.constant 0 : index
    %20 = vector.load %arg10[%c0_19, %c0_20, %c0_21] : memref<1x8x16xf32, #tpu.memory_space<vmem>>, vector<1x8x16xf32>
    %21 = vector.shape_cast %20 : vector<1x8x16xf32> to vector<8x16xf32>
    %22 = vector.shape_cast %11 : vector<8x16xf32> to vector<1x8x16xf32>
    tpu.vector_store %arg10[%c0_19, %c0_20, %c0_21], %22 {strides = array<i32>} : memref<1x8x16xf32, #tpu.memory_space<vmem>>, vector<1x8x16xf32>,
    %c0_22 = arith.constant 0 : index
    %c0_23 = arith.constant 0 : index
    %c0_24 = arith.constant 0 : index
    %23 = vector.load %arg11[%c0_22, %c0_23, %c0_24] : memref<1x8x16xf32, #tpu.memory_space<vmem>>, vector<1x8x16xf32>
    %24 = vector.shape_cast %23 : vector<1x8x16xf32> to vector<8x16xf32>
    %25 = vector.shape_cast %16 : vector<8x16xf32> to vector<1x8x16xf32>
    tpu.vector_store %arg11[%c0_22, %c0_23, %c0_24], %25 {strides = array<i32>} : memref<1x8x16xf32, #tpu.memory_space<vmem>>, vector<1x8x16xf32>,
    return
  }
  func.func @transform_0(%arg0: i32, %arg1: i32) -> (i32, i32, i32) {
    %c0_i32 = arith.constant 0 : i32
    %c0_i32_0 = arith.constant 0 : i32
    return %arg0, %arg1, %c0_i32 : i32, i32, i32
  }
  func.func @transform_1(%arg0: i32, %arg1: i32) -> (i32, i32) {
    %c0_i32 = arith.constant 0 : i32
    %c0_i32_0 = arith.constant 0 : i32
    %c0_i32_1 = arith.constant 0 : i32
    return %c0_i32, %c0_i32_0 : i32, i32
  }
  func.func @transform_2(%arg0: i32, %arg1: i32) -> (i32, i32) {
    %c0_i32 = arith.constant 0 : i32
    %c0_i32_0 = arith.constant 0 : i32
    %c0_i32_1 = arith.constant 0 : i32
    return %c0_i32, %c0_i32_0 : i32, i32
  }
  func.func @transform_3(%arg0: i32, %arg1: i32) -> (i32, i32) {
    %c0_i32 = arith.constant 0 : i32
    %c0_i32_0 = arith.constant 0 : i32
    %c0_i32_1 = arith.constant 0 : i32
    return %c0_i32, %c0_i32_0 : i32, i32
  }
  func.func @transform_4(%arg0: i32, %arg1: i32) -> (i32, i32) {
    %c0_i32 = arith.constant 0 : i32
    %c0_i32_0 = arith.constant 0 : i32
    %c0_i32_1 = arith.constant 0 : i32
    return %c0_i32, %c0_i32_0 : i32, i32
  }
  func.func @transform_5(%arg0: i32, %arg1: i32) -> (i32, i32) {
    %c0_i32 = arith.constant 0 : i32
    %c0_i32_0 = arith.constant 0 : i32
    %c0_i32_1 = arith.constant 0 : i32
    return %c0_i32, %c0_i32_0 : i32, i32
  }
  func.func @transform_6(%arg0: i32, %arg1: i32) -> (i32, i32) {
    %c0_i32 = arith.constant 0 : i32
    %c0_i32_0 = arith.constant 0 : i32
    %c0_i32_1 = arith.constant 0 : i32
    return %c0_i32, %c0_i32_0 : i32, i32
  }
  func.func @transform_7(%arg0: i32, %arg1: i32) -> (i32, i32, i32) {
    %c0_i32 = arith.constant 0 : i32
    %c0_i32_0 = arith.constant 0 : i32
    return %arg0, %arg1, %c0_i32 : i32, i32, i32
  }
  func.func @transform_8(%arg0: i32, %arg1: i32) -> (i32, i32, i32) {
    %c0_i32 = arith.constant 0 : i32
    %c0_i32_0 = arith.constant 0 : i32
    return %arg0, %arg1, %c0_i32 : i32, i32, i32
  }
  func.func @transform_9(%arg0: i32, %arg1: i32) -> (i32, i32, i32) {
    %c0_i32 = arith.constant 0 : i32
    %c0_i32_0 = arith.constant 0 : i32
    return %arg0, %arg1, %c0_i32 : i32, i32, i32
  }
}

</mosaic_0001>

<llo_original>
// kernel: tpu_custom_call.1
$region0: #{tpu_custom_call.1}
  #allocation0 [shape = 'u32[]', space=smem, size = 0x4, offset = 0x4, fixed_abs, tag = 'smem constant byte address 0x4 - core index']
  #allocation1 [shape = 'u32[72,128]{1,0:T(1,128)}', space=vmem, size = 0x9000, scoped, tag = 'internal scratch']
  %s0 = inlined_call_operand.vmem [shape: f32[2,8,32], index: 0, kind: input, shape index: {}]
  %s1 = inlined_call_operand.vmem [shape: f32[32,16], index: 1, kind: input, shape index: {}]
  %s2 = inlined_call_operand.vmem [shape: f32[1,16], index: 2, kind: input, shape index: {}]
  %s3 = inlined_call_operand.vmem [shape: f32[32,16], index: 3, kind: input, shape index: {}]
  %s4 = inlined_call_operand.vmem [shape: f32[1,16], index: 4, kind: input, shape index: {}]
  %s5 = inlined_call_operand.vmem [shape: f32[32,16], index: 5, kind: input, shape index: {}]
  %s6 = inlined_call_operand.vmem [shape: f32[1,16], index: 6, kind: input, shape index: {}]
  %s7 = inlined_call_operand.hbm [shape: f32[2,8,16], index: 7, kind: output, shape index: {0}]
  %s8 = inlined_call_operand.hbm [shape: f32[2,8,16], index: 8, kind: output, shape index: {1}]
  %s9 = inlined_call_operand.hbm [shape: f32[2,8,16], index: 9, kind: output, shape index: {2}]
  %10 = xla_tuple %s7, %s8, %s9
  %s11 = sld [smem:[#allocation0]]
  $region77: #{tpu_custom_call.1} parent=0
    _
  %s13 = ssub.s32 1, %s11
  %s14 = scalar_select 0, %s13, %s11
  $region1: #{tpu_custom_call.1} parent=0
    #allocation2 [shape = 'u8[8192]{0}', space=vmem, size = 0x2000, scoped, tag = 'output window, operand 0']
    #allocation3 [shape = 's32[2]{0}', space=sflag, size = 0x8, scoped, tag = 'scoped memory for tpu_custom_call.1']
    #allocation4 [shape = 'u8[8192]{0}', space=vmem, size = 0x2000, scoped, tag = 'output window, operand 1']
    #allocation5 [shape = 's32[2]{0}', space=sflag, size = 0x8, scoped, tag = 'scoped memory for tpu_custom_call.1']
    #allocation6 [shape = 'u8[8192]{0}', space=vmem, size = 0x2000, scoped, tag = 'output window, operand 2']
    %15 = vsyncpa [#allocation3], 0
    %s16 = scalar_lea.sflag [#allocation3], 1
    %17 = vsyncpa %s16, 0
    %18 = vsyncpa [#allocation5], 0
    %s19 = scalar_lea.sflag [#allocation5], 1
    %20 = vsyncpa %s19, 0
    loop: start=0, step=1, limit=4
    $region2: #{tpu_custom_call.1} parent=1 // loop_pre_header
      _
    $region3: #{tpu_custom_call.1} parent=1 // loop_header
      %s22 = sphi 0, %s26
      %p23 = scmp.ge.s32.totalorder %s22, 4
      %s29 = sphi 0, %s41
      %s30 = sphi 0, %s37
      %s31 = sphi 0, %s29
      %s32 = sphi 0, %s30
      %s33 = sphi 0, %s31
      %s34 = sphi 0, %s32
      %s46 = sphi 0, %s48
      %s49 = sphi 0, %s46
      %s50 = sphi 0, %s49
      %s66 = sphi 0, %s50
      %s70 = sphi 0, %s70
      %s72 = sphi 0, %s70
      %s73 = sphi 0, %s72
      %s87 = sphi 0, %s73
      %s91 = sphi 0, %s91
      %s93 = sphi 0, %s91
      %s94 = sphi 0, %s93
      %s108 = sphi 0, %s94
      %s112 = sphi 0, %s112
      %s114 = sphi 0, %s112
      %s115 = sphi 0, %s114
      %s129 = sphi 0, %s115
      %s133 = sphi 0, %s133
      %s135 = sphi 0, %s133
      %s136 = sphi 0, %s135
      %s150 = sphi 0, %s136
      %s154 = sphi 0, %s154
      %s156 = sphi 0, %s154
      %s157 = sphi 0, %s156
      %s171 = sphi 0, %s157
      %s175 = sphi 0, %s175
      %s177 = sphi 0, %s175
      %s178 = sphi 0, %s177
      %s192 = sphi 0, %s178
      %s200 = sphi 0, %s202
      %s203 = sphi 0, %s200
      %s204 = sphi 0, %s203
      %s220 = sphi 0, %s204
      %s228 = sphi 0, %s230
      %s231 = sphi 0, %s228
      %s232 = sphi 0, %s231
      %s248 = sphi 0, %s232
      %s256 = sphi 0, %s258
      %s259 = sphi 0, %s256
      %s260 = sphi 0, %s259
      %s276 = sphi 0, %s260
    $region4: #{tpu_custom_call.1} parent=1 // loop_header_branch
      %25 = sbr.rel (%p23) target = $region8
    $region5: #{tpu_custom_call.1} parent=1 // loop_body
      %s27 = ssub.s32 %s22, 1
      %s28 = ssub.s32 %s22, 2
      %s35 = sadd.s32 1, %s30
      %p36 = scmp.ge.s32.totalorder %s35, 1
      %s37 = scalar_select %p36, 0, %s35
      %s38 = sadd.s32 1, %s29
      %s39 = scalar_select %p36, %s38, %s29
      %p40 = scmp.ge.s32.totalorder %s39, 2
      %s41 = scalar_select %p40, 0, %s39
      %s42 = ssub.s32 %s29, %s41
      %s43 = ssub.s32 %s30, %s37
      %s44 = sor.u32 %s42, %s43
      %p45 = scmp.eq.s32.totalorder %s44, 0
      %s47 = sadd.s32 %s46, 1
      %s48 = scalar_select %p45, %s46, %s47
      %p51 = pneg %p45
      %p52 = scmp.eq.s32.totalorder %s22, 1
      %p53 = por %p51, %p52
      %p54 = scmp.ne.s32.totalorder %s46, %s49
      %p55 = scmp.eq.s32.totalorder %s22, 0
      %p56 = por %p54, %p55
      %p57 = scmp.ne.s32.totalorder %s46, %s49
      %p58 = scmp.eq.s32.totalorder %s27, 1
      %p59 = por %p57, %p58
      %p60 = scmp.ne.s32.totalorder %s49, %s50
      %p61 = scmp.eq.s32.totalorder %s27, 0
      %p62 = por %p60, %p61
      %p63 = scmp.ne.s32.totalorder %s49, %s50
      %p64 = scmp.eq.s32.totalorder %s28, 1
      %p65 = por %p63, %p64
      %p67 = scmp.ne.s32.totalorder %s50, %s66
      %p68 = scmp.eq.s32.totalorder %s28, 0
      %p69 = por %p67, %p68
      %s71 = sadd.s32 %s70, 1
      %p74 = scmp.eq.s32.totalorder %s22, 1
      %p75 = scmp.ne.s32.totalorder %s70, %s72
      %p76 = scmp.eq.s32.totalorder %s22, 0
      %p77 = por %p75, %p76
      %p78 = scmp.ne.s32.totalorder %s70, %s72
      %p79 = scmp.eq.s32.totalorder %s27, 1
      %p80 = por %p78, %p79
      %p81 = scmp.ne.s32.totalorder %s72, %s73
      %p82 = scmp.eq.s32.totalorder %s27, 0
      %p83 = por %p81, %p82
      %p84 = scmp.ne.s32.totalorder %s72, %s73
      %p85 = scmp.eq.s32.totalorder %s28, 1
      %p86 = por %p84, %p85
      %p88 = scmp.ne.s32.totalorder %s73, %s87
      %p89 = scmp.eq.s32.totalorder %s28, 0
      %p90 = por %p88, %p89
      %s92 = sadd.s32 %s91, 1
      %p95 = scmp.eq.s32.totalorder %s22, 1
      %p96 = scmp.ne.s32.totalorder %s91, %s93
      %p97 = scmp.eq.s32.totalorder %s22, 0
      %p98 = por %p96, %p97
      %p99 = scmp.ne.s32.totalorder %s91, %s93
      %p100 = scmp.eq.s32.totalorder %s27, 1
      %p101 = por %p99, %p100
      %p102 = scmp.ne.s32.totalorder %s93, %s94
      %p103 = scmp.eq.s32.totalorder %s27, 0
      %p104 = por %p102, %p103
      %p105 = scmp.ne.s32.totalorder %s93, %s94
      %p106 = scmp.eq.s32.totalorder %s28, 1
      %p107 = por %p105, %p106
      %p109 = scmp.ne.s32.totalorder %s94, %s108
      %p110 = scmp.eq.s32.totalorder %s28, 0
      %p111 = por %p109, %p110
      %s113 = sadd.s32 %s112, 1
      %p116 = scmp.eq.s32.totalorder %s22, 1
      %p117 = scmp.ne.s32.totalorder %s112, %s114
      %p118 = scmp.eq.s32.totalorder %s22, 0
      %p119 = por %p117, %p118
      %p120 = scmp.ne.s32.totalorder %s112, %s114
      %p121 = scmp.eq.s32.totalorder %s27, 1
      %p122 = por %p120, %p121
      %p123 = scmp.ne.s32.totalorder %s114, %s115
      %p124 = scmp.eq.s32.totalorder %s27, 0
      %p125 = por %p123, %p124
      %p126 = scmp.ne.s32.totalorder %s114, %s115
      %p127 = scmp.eq.s32.totalorder %s28, 1
      %p128 = por %p126, %p127
      %p130 = scmp.ne.s32.totalorder %s115, %s129
      %p131 = scmp.eq.s32.totalorder %s28, 0
      %p132 = por %p130, %p131
      %s134 = sadd.s32 %s133, 1
      %p137 = scmp.eq.s32.totalorder %s22, 1
      %p138 = scmp.ne.s32.totalorder %s133, %s135
      %p139 = scmp.eq.s32.totalorder %s22, 0
      %p140 = por %p138, %p139
      %p141 = scmp.ne.s32.totalorder %s133, %s135
      %p142 = scmp.eq.s32.totalorder %s27, 1
      %p143 = por %p141, %p142
      %p144 = scmp.ne.s32.totalorder %s135, %s136
      %p145 = scmp.eq.s32.totalorder %s27, 0
      %p146 = por %p144, %p145
      %p147 = scmp.ne.s32.totalorder %s135, %s136
      %p148 = scmp.eq.s32.totalorder %s28, 1
      %p149 = por %p147, %p148
      %p151 = scmp.ne.s32.totalorder %s136, %s150
      %p152 = scmp.eq.s32.totalorder %s28, 0
      %p153 = por %p151, %p152
      %s155 = sadd.s32 %s154, 1
      %p158 = scmp.eq.s32.totalorder %s22, 1
      %p159 = scmp.ne.s32.totalorder %s154, %s156
      %p160 = scmp.eq.s32.totalorder %s22, 0
      %p161 = por %p159, %p160
      %p162 = scmp.ne.s32.totalorder %s154, %s156
      %p163 = scmp.eq.s32.totalorder %s27, 1
      %p164 = por %p162, %p163
      %p165 = scmp.ne.s32.totalorder %s156, %s157
      %p166 = scmp.eq.s32.totalorder %s27, 0
      %p167 = por %p165, %p166
      %p168 = scmp.ne.s32.totalorder %s156, %s157
      %p169 = scmp.eq.s32.totalorder %s28, 1
      %p170 = por %p168, %p169
      %p172 = scmp.ne.s32.totalorder %s157, %s171
      %p173 = scmp.eq.s32.totalorder %s28, 0
      %p174 = por %p172, %p173
      %s176 = sadd.s32 %s175, 1
      %p179 = scmp.eq.s32.totalorder %s22, 1
      %p180 = scmp.ne.s32.totalorder %s175, %s177
      %p181 = scmp.eq.s32.totalorder %s22, 0
      %p182 = por %p180, %p181
      %p183 = scmp.ne.s32.totalorder %s175, %s177
      %p184 = scmp.eq.s32.totalorder %s27, 1
      %p185 = por %p183, %p184
      %p186 = scmp.ne.s32.totalorder %s177, %s178
      %p187 = scmp.eq.s32.totalorder %s27, 0
      %p188 = por %p186, %p187
      %p189 = scmp.ne.s32.totalorder %s177, %s178
      %p190 = scmp.eq.s32.totalorder %s28, 1
      %p191 = por %p189, %p190
      %p193 = scmp.ne.s32.totalorder %s178, %s192
      %p194 = scmp.eq.s32.totalorder %s28, 0
      %p195 = por %p193, %p194
      %s196 = ssub.s32 %s29, %s41
      %s197 = ssub.s32 %s30, %s37
      %s198 = sor.u32 %s196, %s197
      %p199 = scmp.eq.s32.totalorder %s198, 0
      %s201 = sadd.s32 %s200, 1
      %s202 = scalar_select %p199, %s200, %s201
      %p205 = pneg %p199
      %p206 = scmp.eq.s32.totalorder %s22, 1
      %p207 = por %p205, %p206
      %p208 = scmp.ne.s32.totalorder %s200, %s203
      %p209 = scmp.eq.s32.totalorder %s22, 0
      %p210 = por %p208, %p209
      %p211 = scmp.ne.s32.totalorder %s200, %s203
      %p212 = scmp.eq.s32.totalorder %s27, 1
      %p213 = por %p211, %p212
      %p214 = scmp.ne.s32.totalorder %s203, %s204
      %p215 = scmp.eq.s32.totalorder %s27, 0
      %p216 = por %p214, %p215
      %p217 = scmp.ne.s32.totalorder %s203, %s204
      %p218 = scmp.eq.s32.totalorder %s28, 1
      %p219 = por %p217, %p218
      %p221 = scmp.ne.s32.totalorder %s204, %s220
      %p222 = scmp.eq.s32.totalorder %s28, 0
      %p223 = por %p221, %p222
      %s224 = ssub.s32 %s29, %s41
      %s225 = ssub.s32 %s30, %s37
      %s226 = sor.u32 %s224, %s225
      %p227 = scmp.eq.s32.totalorder %s226, 0
      %s229 = sadd.s32 %s228, 1
      %s230 = scalar_select %p227, %s228, %s229
      %p233 = pneg %p227
      %p234 = scmp.eq.s32.totalorder %s22, 1
      %p235 = por %p233, %p234
      %p236 = scmp.ne.s32.totalorder %s228, %s231
      %p237 = scmp.eq.s32.totalorder %s22, 0
      %p238 = por %p236, %p237
      %p239 = scmp.ne.s32.totalorder %s228, %s231
      %p240 = scmp.eq.s32.totalorder %s27, 1
      %p241 = por %p239, %p240
      %p242 = scmp.ne.s32.totalorder %s231, %s232
      %p243 = scmp.eq.s32.totalorder %s27, 0
      %p244 = por %p242, %p243
      %p245 = scmp.ne.s32.totalorder %s231, %s232
      %p246 = scmp.eq.s32.totalorder %s28, 1
      %p247 = por %p245, %p246
      %p249 = scmp.ne.s32.totalorder %s232, %s248
      %p250 = scmp.eq.s32.totalorder %s28, 0
      %p251 = por %p249, %p250
      %s252 = ssub.s32 %s29, %s41
      %s253 = ssub.s32 %s30, %s37
      %s254 = sor.u32 %s252, %s253
      %p255 = scmp.eq.s32.totalorder %s254, 0
      %s257 = sadd.s32 %s256, 1
      %s258 = scalar_select %p255, %s256, %s257
      %p261 = pneg %p255
      %p262 = scmp.eq.s32.totalorder %s22, 1
      %p263 = por %p261, %p262
      %p264 = scmp.ne.s32.totalorder %s256, %s259
      %p265 = scmp.eq.s32.totalorder %s22, 0
      %p266 = por %p264, %p265
      %p267 = scmp.ne.s32.totalorder %s256, %s259
      %p268 = scmp.eq.s32.totalorder %s27, 1
      %p269 = por %p267, %p268
      %p270 = scmp.ne.s32.totalorder %s259, %s260
      %p271 = scmp.eq.s32.totalorder %s27, 0
      %p272 = por %p270, %p271
      %p273 = scmp.ne.s32.totalorder %s259, %s260
      %p274 = scmp.eq.s32.totalorder %s28, 1
      %p275 = por %p273, %p274
      %p277 = scmp.ne.s32.totalorder %s260, %s276
      %p278 = scmp.eq.s32.totalorder %s28, 0
      %p279 = por %p277, %p278
      %p280 = scmp.le.s32.totalorder 1, %s22
      %p281 = scmp.lt.s32.totalorder %s22, 3
      %p282 = pnand %p280, %p281
      %p283 = pneg %p282
      // Predicated region
      $region9: #{tpu_custom_call.1} parent=5 // pred_check
        _
      $region10: #{tpu_custom_call.1} parent=5 // pred_check_branch
        %285 = sbr.rel (%p282) target = $region12
      $region11: #{tpu_custom_call.1} parent=5 // pred_region
        %s286 = ssub.s32 %s22, 1
        // Predicated region
        $region13: #{tpu_custom_call.1} parent=11 // pred_check
          %p287 = pneg %p83
        $region14: #{tpu_custom_call.1} parent=11 // pred_check_branch
          %289 = sbr.rel (%p287) target = $region16
        $region15: #{tpu_custom_call.1} parent=11 // pred_region
          _
        $region16: #{tpu_custom_call.1} parent=11 // pred_fallthru
          _
        // Predicated region
        $region17: #{tpu_custom_call.1} parent=11 // pred_check
          %p290 = pneg %p104
        $region18: #{tpu_custom_call.1} parent=11 // pred_check_branch
          %292 = sbr.rel (%p290) target = $region20
        $region19: #{tpu_custom_call.1} parent=11 // pred_region
          _
        $region20: #{tpu_custom_call.1} parent=11 // pred_fallthru
          _
        // Predicated region
        $region21: #{tpu_custom_call.1} parent=11 // pred_check
          %p293 = pneg %p125
        $region22: #{tpu_custom_call.1} parent=11 // pred_check_branch
          %295 = sbr.rel (%p293) target = $region24
        $region23: #{tpu_custom_call.1} parent=11 // pred_region
          _
        $region24: #{tpu_custom_call.1} parent=11 // pred_fallthru
          _
        // Predicated region
        $region25: #{tpu_custom_call.1} parent=11 // pred_check
          %p296 = pneg %p146
        $region26: #{tpu_custom_call.1} parent=11 // pred_check_branch
          %298 = sbr.rel (%p296) target = $region28
        $region27: #{tpu_custom_call.1} parent=11 // pred_region
          _
        $region28: #{tpu_custom_call.1} parent=11 // pred_fallthru
          _
        // Predicated region
        $region29: #{tpu_custom_call.1} parent=11 // pred_check
          %p299 = pneg %p167
        $region30: #{tpu_custom_call.1} parent=11 // pred_check_branch
          %301 = sbr.rel (%p299) target = $region32
        $region31: #{tpu_custom_call.1} parent=11 // pred_region
          _
        $region32: #{tpu_custom_call.1} parent=11 // pred_fallthru
          _
        // Predicated region
        $region33: #{tpu_custom_call.1} parent=11 // pred_check
          %p302 = pneg %p188
        $region34: #{tpu_custom_call.1} parent=11 // pred_check_branch
          %304 = sbr.rel (%p302) target = $region36
        $region35: #{tpu_custom_call.1} parent=11 // pred_region
          _
        $region36: #{tpu_custom_call.1} parent=11 // pred_fallthru
          _
      $region12: #{tpu_custom_call.1} parent=5 // pred_fallthru
        _
      %p305 = scmp.lt.s32.totalorder %s22, 2
      // Predicated region
      $region37: #{tpu_custom_call.1} parent=5 // pred_check
        %p306 = pneg %p305
      $region38: #{tpu_custom_call.1} parent=5 // pred_check_branch
        %308 = sbr.rel (%p306) target = $region40
      $region39: #{tpu_custom_call.1} parent=5 // pred_region
        // Predicated region
        $region41: #{tpu_custom_call.1} parent=39 // pred_check
          %p309 = pneg %p56
        $region42: #{tpu_custom_call.1} parent=39 // pred_check_branch
          %311 = sbr.rel (%p309) target = $region44
        $region43: #{tpu_custom_call.1} parent=39 // pred_region
          %p312 = scmp.lt.s32.totalorder %s29, 1
          %s313 = scalar_select %p312, %s29, 1
          %p314 = scmp.lt.s32.totalorder %s30, 0
          %s315 = scalar_select %p314, %s30, 0
          %s316 = sadd.s32 %s315, %s313
          %s317 = smul.addr %s316, 8
          %s318 = scalar_lea.vmem %s0, %s317
        $region44: #{tpu_custom_call.1} parent=39 // pred_fallthru
          _
      $region40: #{tpu_custom_call.1} parent=5 // pred_fallthru
        _
      %p319 = scmp.le.s32.totalorder 1, %s22
      %p320 = scmp.lt.s32.totalorder %s22, 3
      %p321 = pnand %p319, %p320
      %p322 = pneg %p321
      // Predicated region
      $region45: #{tpu_custom_call.1} parent=5 // pred_check
        _
      $region46: #{tpu_custom_call.1} parent=5 // pred_check_branch
        %324 = sbr.rel (%p321) target = $region48
      $region47: #{tpu_custom_call.1} parent=5 // pred_region
        %s325 = ssub.s32 %s22, 1
        %p326 = scmp.lt.s32.totalorder %s31, 1
        %s327 = scalar_select %p326, %s31, 1
        %p328 = scmp.lt.s32.totalorder %s32, 0
        %s329 = scalar_select %p328, %s32, 0
        %s330 = sadd.s32 %s329, %s327
        %s331 = smul.addr %s330, 8
        %s332 = scalar_lea.vmem %s0, %s331
        %p333 = pneg %p62
        %p334 = pneg %p59
        %p335 = pneg %p83
        %p336 = pneg %p80
        %p337 = pneg %p104
        %p338 = pneg %p101
        %p339 = pneg %p125
        %p340 = pneg %p122
        %p341 = pneg %p146
        %p342 = pneg %p143
        %p343 = pneg %p167
        %p344 = pneg %p164
        %p345 = pneg %p188
        %p346 = pneg %p185
        %p347 = pneg %p216
        %p348 = pneg %p213
        %s349 = sand.u32 %s203, 1
        %s350 = scalar_lea.sflag [#allocation3], %s349
        %s351 = sand.u32 %s203, 1
        %s352 = smul.addr %s351, 8
        %s353 = scalar_lea.vmem [#allocation2], %s352
        %p354 = pneg %p244
        %p355 = pneg %p241
        %s356 = sand.u32 %s27, 1
        %s357 = scalar_lea.sflag [#allocation5], %s356
        %s358 = sand.u32 %s231, 1
        %s359 = smul.addr %s358, 8
        %s360 = scalar_lea.vmem [#allocation4], %s359
        %p361 = pneg %p272
        %p362 = pneg %p269
        %s363 = sand.u32 %s27, 1
        %s364 = scalar_lea.sflag [#allocation5], %s363
        %s365 = sand.u32 %s259, 1
        %s366 = smul.addr %s365, 8
        %s367 = scalar_lea.vmem [#allocation6], %s366
        %p368 = scmp.lt.s32.totalorder %s31, 1
        %s369 = scalar_select %p368, %s31, 1
        %p370 = scmp.lt.s32.totalorder %s32, 0
        %s371 = scalar_select %p370, %s32, 0
        %s372 = sadd.s32 %s371, %s369
        %s373 = smul.addr %s372, 8
        %s374 = scalar_lea.vmem %s0, %s373
        %v375 = vld [vmem:[%s374] sm:$0xff]
        %v376 = vld [vmem:[%s1] sm:$0xff]
        %v377 = vld [vmem:[%s1 + $0x8] sm:$0xff]
        %v378 = vld [vmem:[%s1 + $0x10] sm:$0xff]
        %v379 = vld [vmem:[%s1 + $0x18] sm:$0xff]
        %v380 = vld [vmem:[%s2] sm:$0x1]
        %v382 = vperm.slane %v380, 0
        %vm384 = vcmask 261120
        %v386 = vsel %vm384, %v375, 0
        %388 = vmatpush.msra.mxu0 0.0
        %389 = vmatpush.msra.mxu0 0.0
        %390 = vmatpush.msra.mxu0 0.0
        %391 = vmatpush.msra.mxu0 0.0
        %392 = vmatpush.msra.mxu0 0.0
        %393 = vmatpush.msra.mxu0 0.0
        %394 = vmatpush.msra.mxu0 0.0
        %395 = vmatpush.msra.mxu0 0.0
        %396 = vmatpush.msra.mxu0 0.0
        %397 = vmatpush.msra.mxu0 0.0
        %398 = vmatpush.msra.mxu0 0.0
        %399 = vmatpush.msra.mxu0 0.0
        %400 = vmatpush.msra.mxu0 %v379
        %401 = vmatpush.msra.mxu0 %v378
        %402 = vmatpush.msra.mxu0 %v377
        %403 = vmatpush.msra.mxu0 %v376
        %404 = vmatmul.f32.gmra.mxu0 %v386
        %v405 = vpop.f32.mrf.mxu0
        %v406 = vadd.f32 %v382, %v405
        %407 = vdwg.mxu0
        %v408 = vld [vmem:[%s3] sm:$0xff]
        %v409 = vld [vmem:[%s3 + $0x8] sm:$0xff]
        %v410 = vld [vmem:[%s3 + $0x10] sm:$0xff]
        %v411 = vld [vmem:[%s3 + $0x18] sm:$0xff]
        %v412 = vld [vmem:[%s4] sm:$0x1]
        %v414 = vperm.slane %v412, 0
        %416 = vmatpush.msra.mxu0 0.0
        %417 = vmatpush.msra.mxu0 0.0
        %418 = vmatpush.msra.mxu0 0.0
        %419 = vmatpush.msra.mxu0 0.0
        %420 = vmatpush.msra.mxu0 0.0
        %421 = vmatpush.msra.mxu0 0.0
        %422 = vmatpush.msra.mxu0 0.0
        %423 = vmatpush.msra.mxu0 0.0
        %424 = vmatpush.msra.mxu0 0.0
        %425 = vmatpush.msra.mxu0 0.0
        %426 = vmatpush.msra.mxu0 0.0
        %427 = vmatpush.msra.mxu0 0.0
        %428 = vmatpush.msra.mxu0 %v411
        %429 = vmatpush.msra.mxu0 %v410
        %430 = vmatpush.msra.mxu0 %v409
        %431 = vmatpush.msra.mxu0 %v408
        %432 = vmatmul.f32.gmra.mxu0 %v386
        %v433 = vpop.f32.mrf.mxu0
        %v434 = vadd.f32 %v414, %v433
        %435 = vdwg.mxu0
        %v436 = vld [vmem:[%s5] sm:$0xff]
        %v437 = vld [vmem:[%s5 + $0x8] sm:$0xff]
        %v438 = vld [vmem:[%s5 + $0x10] sm:$0xff]
        %v439 = vld [vmem:[%s5 + $0x18] sm:$0xff]
        %v440 = vld [vmem:[%s6] sm:$0x1]
        %v442 = vperm.slane %v440, 0
        %444 = vmatpush.msra.mxu0 0.0
        %445 = vmatpush.msra.mxu0 0.0
        %446 = vmatpush.msra.mxu0 0.0
        %447 = vmatpush.msra.mxu0 0.0
        %448 = vmatpush.msra.mxu0 0.0
        %449 = vmatpush.msra.mxu0 0.0
        %450 = vmatpush.msra.mxu0 0.0
        %451 = vmatpush.msra.mxu0 0.0
        %452 = vmatpush.msra.mxu0 0.0
        %453 = vmatpush.msra.mxu0 0.0
        %454 = vmatpush.msra.mxu0 0.0
        %455 = vmatpush.msra.mxu0 0.0
        %456 = vmatpush.msra.mxu0 %v439
        %457 = vmatpush.msra.mxu0 %v438
        %458 = vmatpush.msra.mxu0 %v437
        %459 = vmatpush.msra.mxu0 %v436
        %460 = vmatmul.f32.gmra.mxu0 %v386
        %v461 = vpop.f32.mrf.mxu0
        %v462 = vadd.f32 %v442, %v461
        %463 = vdwg.mxu0
        %vm464 = vcmask 130048
        %465 = vst.msk [vmem:[%s353] sm:$0xff] %vm464, %v406
        %466 = vst.msk [vmem:[%s360] sm:$0xff] %vm464, %v434
        %467 = vst.msk [vmem:[%s367] sm:$0xff] %vm464, %v462
        %s468 = sand.u32 %s203, 1
        %s469 = scalar_lea.sflag [#allocation3], %s468
        %s470 = sand.u32 %s203, 1
        %s471 = smul.addr %s470, 8
        %s472 = scalar_lea.vmem [#allocation2], %s471
        %s473 = sand.u32 %s27, 1
        %s474 = scalar_lea.sflag [#allocation5], %s473
        %s475 = sand.u32 %s231, 1
        %s476 = smul.addr %s475, 8
        %s477 = scalar_lea.vmem [#allocation4], %s476
        %s478 = sand.u32 %s27, 1
        %s479 = scalar_lea.sflag [#allocation5], %s478
        %s480 = sand.u32 %s259, 1
        %s481 = smul.addr %s480, 8
        %s482 = scalar_lea.vmem [#allocation6], %s481
        // Predicated region
        $region49: #{tpu_custom_call.1} parent=47 // pred_check
          %p483 = pneg %p213
        $region50: #{tpu_custom_call.1} parent=47 // pred_check_branch
          %485 = sbr.rel (%p483) target = $region52
        $region51: #{tpu_custom_call.1} parent=47 // pred_region
          %487 = vsyncadd %s469, 0
          %s488 = sadd.s32 %s32, %s31
          %s489 = smul.addr %s488, 8
          %s490 = scalar_lea.hbm %s7, %s489
          %s492 = sshll.u32 %s472, 4
          %s493 = int_to_ptr.vmem [resolvable:$true] %s492
          %s494 = sshll.u32 %s490, 4
          %s495 = int_to_ptr.hbm [resolvable:$true] %s494
          %497 = dma.vmem_to_hbm [thread:$0]  %s493, 128, %s495, %s469
        $region52: #{tpu_custom_call.1} parent=47 // pred_fallthru
          _
        // Predicated region
        $region53: #{tpu_custom_call.1} parent=47 // pred_check
          %p498 = pneg %p241
        $region54: #{tpu_custom_call.1} parent=47 // pred_check_branch
          %500 = sbr.rel (%p498) target = $region56
        $region55: #{tpu_custom_call.1} parent=47 // pred_region
          %502 = vsyncadd %s474, 0
          %s503 = sadd.s32 %s32, %s31
          %s504 = smul.addr %s503, 8
          %s505 = scalar_lea.hbm %s8, %s504
          %s507 = sshll.u32 %s477, 4
          %s508 = int_to_ptr.vmem [resolvable:$true] %s507
          %s509 = sshll.u32 %s505, 4
          %s510 = int_to_ptr.hbm [resolvable:$true] %s509
          %512 = dma.vmem_to_hbm [thread:$0]  %s508, 128, %s510, %s474
        $region56: #{tpu_custom_call.1} parent=47 // pred_fallthru
          _
        // Predicated region
        $region57: #{tpu_custom_call.1} parent=47 // pred_check
          %p513 = pneg %p269
        $region58: #{tpu_custom_call.1} parent=47 // pred_check_branch
          %515 = sbr.rel (%p513) target = $region60
        $region59: #{tpu_custom_call.1} parent=47 // pred_region
          %517 = vsyncadd %s479, 0
          %s518 = sadd.s32 %s32, %s31
          %s519 = smul.addr %s518, 8
          %s520 = scalar_lea.hbm %s9, %s519
          %s522 = sshll.u32 %s482, 4
          %s523 = int_to_ptr.vmem [resolvable:$true] %s522
          %s524 = sshll.u32 %s520, 4
          %s525 = int_to_ptr.hbm [resolvable:$true] %s524
          %527 = dma.vmem_to_hbm [thread:$0]  %s523, 128, %s525, %s479
        $region60: #{tpu_custom_call.1} parent=47 // pred_fallthru
          _
      $region48: #{tpu_custom_call.1} parent=5 // pred_fallthru
        _
      %p528 = scmp.le.s32.totalorder 2, %s22
      // Predicated region
      $region61: #{tpu_custom_call.1} parent=5 // pred_check
        %p529 = pneg %p528
      $region62: #{tpu_custom_call.1} parent=5 // pred_check_branch
        %531 = sbr.rel (%p529) target = $region64
      $region63: #{tpu_custom_call.1} parent=5 // pred_region
        %s532 = ssub.s32 %s22, 2
        // Predicated region
        $region65: #{tpu_custom_call.1} parent=63 // pred_check
          %p533 = pneg %p219
        $region66: #{tpu_custom_call.1} parent=63 // pred_check_branch
          %535 = sbr.rel (%p533) target = $region68
        $region67: #{tpu_custom_call.1} parent=63 // pred_region
          %s536 = sand.u32 %s204, 1
          %s537 = scalar_lea.sflag [#allocation3], %s536
          %s538 = sand.u32 %s204, 1
          %s539 = smul.addr %s538, 8
          %s540 = scalar_lea.vmem [#allocation2], %s539
          %542 = dma.done %s537, 128
        $region68: #{tpu_custom_call.1} parent=63 // pred_fallthru
          _
        // Predicated region
        $region69: #{tpu_custom_call.1} parent=63 // pred_check
          %p543 = pneg %p247
        $region70: #{tpu_custom_call.1} parent=63 // pred_check_branch
          %545 = sbr.rel (%p543) target = $region72
        $region71: #{tpu_custom_call.1} parent=63 // pred_region
          %s546 = sand.u32 %s28, 1
          %s547 = scalar_lea.sflag [#allocation5], %s546
          %s548 = sand.u32 %s232, 1
          %s549 = smul.addr %s548, 8
          %s550 = scalar_lea.vmem [#allocation4], %s549
          %552 = dma.done %s547, 128
        $region72: #{tpu_custom_call.1} parent=63 // pred_fallthru
          _
        // Predicated region
        $region73: #{tpu_custom_call.1} parent=63 // pred_check
          %p553 = pneg %p275
        $region74: #{tpu_custom_call.1} parent=63 // pred_check_branch
          %555 = sbr.rel (%p553) target = $region76
        $region75: #{tpu_custom_call.1} parent=63 // pred_region
          %s556 = sand.u32 %s28, 1
          %s557 = scalar_lea.sflag [#allocation5], %s556
          %s558 = sand.u32 %s260, 1
          %s559 = smul.addr %s558, 8
          %s560 = scalar_lea.vmem [#allocation6], %s559
          %562 = dma.done %s557, 128
        $region76: #{tpu_custom_call.1} parent=63 // pred_fallthru
          _
      $region64: #{tpu_custom_call.1} parent=5 // pred_fallthru
        _
    $region6: #{tpu_custom_call.1} parent=1 // loop_footer
      %s26 = sadd.s32 1, %s22
    $region7: #{tpu_custom_call.1} parent=1 // loop_footer_branch
      %21 = sbr.rel target = $region3
    $region8: #{tpu_custom_call.1} parent=1 // loop_exit
      _
    %563 = vsyncpa [#allocation3], 1
    %s564 = scalar_lea.sflag [#allocation3], 1
    %565 = vsyncpa %s564, 1
    %566 = vsyncpa [#allocation5], 1
    %s567 = scalar_lea.sflag [#allocation5], 1
    %568 = vsyncpa %s567, 1

</llo_original>
